<compile_context>
chip_gen: v7x
topology: tpu7x:2x2x1
jax: 0.10.0
libtpu: 0.0.40
codegen_flags: <defaults>
</compile_context>

<pallas_src>
from functools import partial

import jax
import jax.numpy as jnp
from jax.experimental import pallas as pl
from jax.experimental.pallas import tpu as pltpu


def _round_up(n: int, m: int) -> int:
    return ((n + m - 1) // m) * m


def _cdiv(a: int, b: int) -> int:
    return (a + b - 1) // b


# ---------------------------------------------------------------------------
# Kernel
# ---------------------------------------------------------------------------
def ann_v4_shared_kernel(x_ref, w1_ref, wp_ref, bp_ref, out_ref, *, nchunks, chunk):
    """x_ref: (TB, I_pad); w1_ref: (I_pad, D); wp_ref: (3, D, D);
    bp_ref: (4, 1, D); out_ref: (TB, D).

    Layer 0 = fc1 (K = I_pad), layers 1..2 = fc2/fc3 (padded to D x D),
    layer 3 = fused [actor | critic] head.  tanh after layers 0..2 only.
    Rows are processed in `nchunks` independent chunks of `chunk` rows so the
    scheduler can overlap one chunk's MXU dot with another chunk's EUP tanh.
    Zero padding is semantics-preserving: padded rows/cols contribute 0 and
    tanh(0) = 0, so padded lanes stay 0 through the trunk.
    """
    mxu_dt = wp_ref.dtype                      # f32, or bf16 in throughput mode
    w1 = w1_ref[...]
    b = [bp_ref[l] for l in range(4)]          # each (1, D), f32 — hoisted

    # Layer 0: (chunk, I_pad) @ (I_pad, D) -> tanh
    hs = []
    for c in range(nchunks):
        xc = x_ref[c * chunk:(c + 1) * chunk, :].astype(mxu_dt)
        hs.append(jnp.tanh(
            jnp.dot(xc, w1, preferred_element_type=jnp.float32) + b[0]))

    # Layers 1..2: (chunk, D) @ (D, D) -> tanh
    for layer in range(2):
        w = wp_ref[layer]
        hs = [jnp.tanh(
                  jnp.dot(h.astype(mxu_dt), w,
                          preferred_element_type=jnp.float32) + b[layer + 1])
              for h in hs]

    # Fused head: columns [0:O) = probs, column O = value (rest zero pad).
    w_head = wp_ref[2]
    for c in range(nchunks):
        out_ref[c * chunk:(c + 1) * chunk, :] = (
            jnp.dot(hs[c].astype(mxu_dt), w_head,
                    preferred_element_type=jnp.float32) + b[3]
        ).astype(out_ref.dtype)


# ---------------------------------------------------------------------------
# Wrapper
# ---------------------------------------------------------------------------
def ann_v4_shared_forward(x, w1_packed, w_packed, b_packed, n_outputs,
                          tb_max=2048):
    """Fused forward. x: (B, I) f32. Returns (value (B,1), probs (B,O))."""
    B, I = x.shape
    I_pad = w1_packed.shape[0]
    D = w_packed.shape[-1]

    # --- batch tiling: avoid pathological padding, amortize per-step cost ---
    rows8 = _round_up(B, 8)
    n_steps = _cdiv(rows8, tb_max)
    if rows8 >= 16:
        # >= 2 grid steps lets the "parallel" batch axis shard across both
        # TensorCores on v7x; costs one extra ~0.35 us step on v5e/v6e.
        n_steps = max(n_steps, 2)
    TB = _round_up(_cdiv(rows8, n_steps), 8)
    B_pad = n_steps * TB

    # Pad only the batch rows (and feature dim to a sublane multiple).
    if B_pad == B and I_pad == I:
        x_in = x
    else:
        x_in = jnp.zeros((B_pad, I_pad), x.dtype).at[:B, :I].set(x)

    # --- row chunking inside a tile (MXU/EUP overlap) ---
    if TB >= 64 and TB % 32 == 0:
        nchunks = 4
    elif TB >= 32 and TB % 16 == 0:
        nchunks = 2
    else:
        nchunks = 1
    chunk = TB // nchunks

    out = pl.pallas_call(
        partial(ann_v4_shared_kernel, nchunks=nchunks, chunk=chunk),
        out_shape=jax.ShapeDtypeStruct((B_pad, D), jnp.float32),
        grid=(n_steps,),
        in_specs=[
            pl.BlockSpec((TB, I_pad), lambda i: (i, 0)),     # activations: tiled
            pl.BlockSpec((I_pad, D), lambda i: (0, 0)),      # fc1 weight: resident
            pl.BlockSpec((3, D, D), lambda i: (0, 0, 0)),    # fc2/fc3/head: resident
            pl.BlockSpec((4, 1, D), lambda i: (0, 0, 0)),    # biases: resident
        ],
        out_specs=pl.BlockSpec((TB, D), lambda i: (i, 0)),
        compiler_params=pltpu.CompilerParams(
            dimension_semantics=("parallel",)                # megacore on v7x
        ),
    )(x_in, w1_packed, w_packed, b_packed)

    probs = out[:B, :n_outputs]
    value = out[:B, n_outputs:n_outputs + 1]
    return value, probs


# ---------------------------------------------------------------------------
# Parameter init / packing
# ---------------------------------------------------------------------------
def init_params(key, inputs, outputs):
    """PyTorch-Linear-style init: U(-1/sqrt(fan_in), 1/sqrt(fan_in)).
    Weights stored (fan_in, fan_out) (transposed vs. PyTorch); biases (1, fan_out)."""
    hidden = 2 * inputs
    dims = [
        ("w1", "b1", inputs, hidden),
        ("w2", "b2", hidden, hidden),
        ("w3", "b3", hidden, inputs),
        ("wa", "ba", inputs, outputs),
        ("wc", "bc", inputs, 1),
    ]
    params = {}
    keys = jax.random.split(key, 2 * len(dims))
    for i, (wname, bname, fan_in, fan_out) in enumerate(dims):
        bound = 1.0 / (fan_in ** 0.5)
        params[wname] = jax.random.uniform(
            keys[2 * i], (fan_in, fan_out), jnp.float32, -bound, bound)
        params[bname] = jax.random.uniform(
            keys[2 * i + 1], (1, fan_out), jnp.float32, -bound, bound)
    return params


def pack_params(params, inputs, outputs, dtype=jnp.float32):
    """Pack fc1 into its own (I_pad, D) buffer, fc2/fc3/[actor|critic]-head
    into one zero-padded (3, D, D) buffer, all biases into one f32 (4, 1, D)
    buffer.  Pass dtype=jnp.bfloat16 for the MXU throughput mode (v6e/v7x)."""
    hidden = 2 * inputs
    I_pad = _round_up(inputs, 8)
    D = _round_up(max(hidden, outputs + 1), 128)

    w1 = jnp.zeros((I_pad, D), dtype).at[:inputs, :hidden].set(
        params["w1"].astype(dtype))

    wp = jnp.zeros((3, D, D), dtype)
    wp = wp.at[0, :hidden, :hidden].set(params["w2"].astype(dtype))
    wp = wp.at[1, :hidden, :inputs].set(params["w3"].astype(dtype))
    wp = wp.at[2, :inputs, :outputs].set(params["wa"].astype(dtype))          # probs
    wp = wp.at[2, :inputs, outputs:outputs + 1].set(params["wc"].astype(dtype))  # value

    bp = jnp.zeros((4, 1, D), jnp.float32)
    bp = bp.at[0, 0, :hidden].set(params["b1"][0])
    bp = bp.at[1, 0, :hidden].set(params["b2"][0])
    bp = bp.at[2, 0, :inputs].set(params["b3"][0])
    bp = bp.at[3, 0, :outputs].set(params["ba"][0])
    bp = bp.at[3, 0, outputs:outputs + 1].set(params["bc"][0])
    return w1, wp, bp


def reference_forward(x, params):
    """Pure-JAX reference for correctness checking."""
    h = jnp.tanh(x @ params["w1"] + params["b1"])
    h = jnp.tanh(h @ params["w2"] + params["b2"])
    h = jnp.tanh(h @ params["w3"] + params["b3"])
    probs = h @ params["wa"] + params["ba"]
    value = h @ params["wc"] + params["bc"]
    return value, probs


if __name__ == "__main__":
    key = jax.random.PRNGKey(0)
    B, I, O = 8, 32, 8  # batch, inputs, outputs

    kx, kp = jax.random.split(key)
    x = jax.random.normal(kx, (B, I), jnp.float32)
    params = init_params(kp, I, O)

    # Pack once on the host (one-time cost, reused across forward calls).
    w1_packed, w_packed, b_packed = pack_params(params, I, O)

    value, probs = ann_v4_shared_forward(x, w1_packed, w_packed, b_packed, O)
    jax.block_until_ready((value, probs))

    value_ref, probs_ref = reference_forward(x, params)
    assert value.shape == (B, 1) and probs.shape == (B, O)
    assert jnp.allclose(value, value_ref, atol=1e-5, rtol=1e-5)
    assert jnp.allclose(probs, probs_ref, atol=1e-5, rtol=1e-5)

    print("KERNEL_OK")
</pallas_src>

<mosaic_0001>
module attributes {stable_mosaic.version = 11 : i64} {
  func.func @ann_v4_shared_kernel(%arg0: i32, %arg1: memref<8x32xf32, #tpu.memory_space<vmem>>, %arg2: memref<32x128xf32, #tpu.memory_space<vmem>>, %arg3: memref<3x128x128xf32, #tpu.memory_space<vmem>>, %arg4: memref<4x1x128xf32, #tpu.memory_space<vmem>>, %arg5: memref<8x128xf32, #tpu.memory_space<vmem>>) attributes {dimension_semantics = [#tpu.dimension_semantics<parallel>], iteration_bounds = array<i64: 1>, scalar_prefetch = 0 : i64, scratch_operands = 0 : i64, tpu.core_type = #tpu.core_type<tc>, window_params = [{transform_indices = @transform_0, window_bounds = array<i64: 8, 32>}, {pipeline_mode = #tpu.pipeline_mode<synchronous>, transform_indices = @transform_1, window_bounds = array<i64: 32, 128>}, {pipeline_mode = #tpu.pipeline_mode<synchronous>, transform_indices = @transform_2, window_bounds = array<i64: 3, 128, 128>}, {pipeline_mode = #tpu.pipeline_mode<synchronous>, transform_indices = @transform_3, window_bounds = array<i64: 4, 1, 128>}, {transform_indices = @transform_4, window_bounds = array<i64: 8, 128>}]} {
    %c0 = arith.constant 0 : index
    %c0_0 = arith.constant 0 : index
    %0 = vector.load %arg2[%c0, %c0_0] : memref<32x128xf32, #tpu.memory_space<vmem>>, vector<32x128xf32>
    %c0_1 = arith.constant 0 : index
    %c0_2 = arith.constant 0 : index
    %c0_3 = arith.constant 0 : index
    %1 = vector.load %arg4[%c0_1, %c0_2, %c0_3] : memref<4x1x128xf32, #tpu.memory_space<vmem>>, vector<1x1x128xf32>
    %2 = vector.shape_cast %1 : vector<1x1x128xf32> to vector<1x128xf32>
    %c1 = arith.constant 1 : index
    %c0_4 = arith.constant 0 : index
    %c0_5 = arith.constant 0 : index
    %3 = vector.load %arg4[%c1, %c0_4, %c0_5] : memref<4x1x128xf32, #tpu.memory_space<vmem>>, vector<1x1x128xf32>
    %4 = vector.shape_cast %3 : vector<1x1x128xf32> to vector<1x128xf32>
    %c2 = arith.constant 2 : index
    %c0_6 = arith.constant 0 : index
    %c0_7 = arith.constant 0 : index
    %5 = vector.load %arg4[%c2, %c0_6, %c0_7] : memref<4x1x128xf32, #tpu.memory_space<vmem>>, vector<1x1x128xf32>
    %6 = vector.shape_cast %5 : vector<1x1x128xf32> to vector<1x128xf32>
    %c3 = arith.constant 3 : index
    %c0_8 = arith.constant 0 : index
    %c0_9 = arith.constant 0 : index
    %7 = vector.load %arg4[%c3, %c0_8, %c0_9] : memref<4x1x128xf32, #tpu.memory_space<vmem>>, vector<1x1x128xf32>
    %8 = vector.shape_cast %7 : vector<1x1x128xf32> to vector<1x128xf32>
    %c0_10 = arith.constant 0 : index
    %c0_11 = arith.constant 0 : index
    %9 = vector.load %arg1[%c0_10, %c0_11] : memref<8x32xf32, #tpu.memory_space<vmem>>, vector<8x32xf32>
    %cst = arith.constant dense<0.000000e+00> : vector<8x128xf32>
    %10 = tpu.matmul %9, %0, %cst {dimension_numbers = #tpu.dot_dimension_numbers<[1], [0], [0], [1], [0, 0, 1, 1], [], []>} : vector<8x32xf32>, vector<32x128xf32>, vector<8x128xf32> -> vector<8x128xf32>
    %11 = vector.broadcast %2 : vector<1x128xf32> to vector<8x128xf32>
    %12 = arith.addf %10, %11 : vector<8x128xf32>
    %13 = math.tanh %12 : vector<8x128xf32>
    %c0_12 = arith.constant 0 : index
    %c0_13 = arith.constant 0 : index
    %c0_14 = arith.constant 0 : index
    %14 = vector.load %arg3[%c0_12, %c0_13, %c0_14] : memref<3x128x128xf32, #tpu.memory_space<vmem>>, vector<1x128x128xf32>
    %15 = vector.shape_cast %14 : vector<1x128x128xf32> to vector<128x128xf32>
    %cst_15 = arith.constant dense<0.000000e+00> : vector<8x128xf32>
    %16 = tpu.matmul %13, %15, %cst_15 {dimension_numbers = #tpu.dot_dimension_numbers<[1], [0], [0], [1], [0, 0, 1, 1], [], []>} : vector<8x128xf32>, vector<128x128xf32>, vector<8x128xf32> -> vector<8x128xf32>
    %17 = vector.broadcast %4 : vector<1x128xf32> to vector<8x128xf32>
    %18 = arith.addf %16, %17 : vector<8x128xf32>
    %19 = math.tanh %18 : vector<8x128xf32>
    %c1_16 = arith.constant 1 : index
    %c0_17 = arith.constant 0 : index
    %c0_18 = arith.constant 0 : index
    %20 = vector.load %arg3[%c1_16, %c0_17, %c0_18] : memref<3x128x128xf32, #tpu.memory_space<vmem>>, vector<1x128x128xf32>
    %21 = vector.shape_cast %20 : vector<1x128x128xf32> to vector<128x128xf32>
    %cst_19 = arith.constant dense<0.000000e+00> : vector<8x128xf32>
    %22 = tpu.matmul %19, %21, %cst_19 {dimension_numbers = #tpu.dot_dimension_numbers<[1], [0], [0], [1], [0, 0, 1, 1], [], []>} : vector<8x128xf32>, vector<128x128xf32>, vector<8x128xf32> -> vector<8x128xf32>
    %23 = vector.broadcast %6 : vector<1x128xf32> to vector<8x128xf32>
    %24 = arith.addf %22, %23 : vector<8x128xf32>
    %25 = math.tanh %24 : vector<8x128xf32>
    %c2_20 = arith.constant 2 : index
    %c0_21 = arith.constant 0 : index
    %c0_22 = arith.constant 0 : index
    %26 = vector.load %arg3[%c2_20, %c0_21, %c0_22] : memref<3x128x128xf32, #tpu.memory_space<vmem>>, vector<1x128x128xf32>
    %27 = vector.shape_cast %26 : vector<1x128x128xf32> to vector<128x128xf32>
    %cst_23 = arith.constant dense<0.000000e+00> : vector<8x128xf32>
    %28 = tpu.matmul %25, %27, %cst_23 {dimension_numbers = #tpu.dot_dimension_numbers<[1], [0], [0], [1], [0, 0, 1, 1], [], []>} : vector<8x128xf32>, vector<128x128xf32>, vector<8x128xf32> -> vector<8x128xf32>
    %29 = vector.broadcast %8 : vector<1x128xf32> to vector<8x128xf32>
    %30 = arith.addf %28, %29 : vector<8x128xf32>
    %c0_24 = arith.constant 0 : index
    %c0_25 = arith.constant 0 : index
    %31 = vector.load %arg5[%c0_24, %c0_25] : memref<8x128xf32, #tpu.memory_space<vmem>>, vector<8x128xf32>
    tpu.vector_store %arg5[%c0_24, %c0_25], %30 {strides = array<i32>} : memref<8x128xf32, #tpu.memory_space<vmem>>, vector<8x128xf32>,
    return
  }
  func.func @transform_0(%arg0: i32) -> (i32, i32) {
    %c0_i32 = arith.constant 0 : i32
    %c0_i32_0 = arith.constant 0 : i32
    return %arg0, %c0_i32 : i32, i32
  }
  func.func @transform_1(%arg0: i32) -> (i32, i32) {
    %c0_i32 = arith.constant 0 : i32
    %c0_i32_0 = arith.constant 0 : i32
    %c0_i32_1 = arith.constant 0 : i32
    return %c0_i32, %c0_i32_0 : i32, i32
  }
  func.func @transform_2(%arg0: i32) -> (i32, i32, i32) {
    %c0_i32 = arith.constant 0 : i32
    %c0_i32_0 = arith.constant 0 : i32
    %c0_i32_1 = arith.constant 0 : i32
    %c0_i32_2 = arith.constant 0 : i32
    return %c0_i32, %c0_i32_0, %c0_i32_1 : i32, i32, i32
  }
  func.func @transform_3(%arg0: i32) -> (i32, i32, i32) {
    %c0_i32 = arith.constant 0 : i32
    %c0_i32_0 = arith.constant 0 : i32
    %c0_i32_1 = arith.constant 0 : i32
    %c0_i32_2 = arith.constant 0 : i32
    return %c0_i32, %c0_i32_0, %c0_i32_1 : i32, i32, i32
  }
  func.func @transform_4(%arg0: i32) -> (i32, i32) {
    %c0_i32 = arith.constant 0 : i32
    %c0_i32_0 = arith.constant 0 : i32
    return %arg0, %c0_i32 : i32, i32
  }
}

</mosaic_0001>

<llo_original>
// kernel: tpu_custom_call.1
$region0: #{tpu_custom_call.1}
  #allocation0 [shape = 'u32[]', space=smem, size = 0x4, offset = 0x4, fixed_abs, tag = 'smem constant byte address 0x4 - core index']
  #allocation1 [shape = 'u32[144,128]{1,0:T(1,128)}', space=vmem, size = 0x12000, scoped, tag = 'internal scratch']
  %s0 = inlined_call_operand.hbm [shape: f32[8,32], index: 0, kind: input, shape index: {}]
  %s1 = inlined_call_operand.hbm [shape: f32[32,128], index: 1, kind: input, shape index: {}]
  %s2 = inlined_call_operand.hbm [shape: f32[3,128,128], index: 2, kind: input, shape index: {}]
  %s3 = inlined_call_operand.vmem [shape: f32[4,1,128], index: 3, kind: input, shape index: {}]
  %s4 = inlined_call_operand.hbm [shape: f32[8,128], index: 4, kind: output, shape index: {}]
  %s5 = sld [smem:[#allocation0]]
  $region38: #{tpu_custom_call.1} parent=0
    _
  %s7 = ssub.s32 1, %s5
  %s8 = scalar_select 0, %s7, %s5
  $region1: #{tpu_custom_call.1} parent=0
    #allocation2 [shape = 'u8[4096]{0}', space=vmem, size = 0x1000, scoped, tag = 'input window, operand 0, single buffered']
    #allocation3 [shape = 's32[1]{0}', space=sflag, size = 0x4, scoped, tag = 'scoped memory for tpu_custom_call.1']
    #allocation4 [shape = 's32[1]{0}', space=sflag, size = 0x4, scoped, tag = 'scoped memory for tpu_custom_call.1']
    #allocation5 [shape = 'u8[16384]{0}', space=vmem, size = 0x4000, scoped, tag = 'input window, operand 1, single buffered']
    #allocation6 [shape = 's32[1]{0}', space=sflag, size = 0x4, scoped, tag = 'scoped memory for tpu_custom_call.1']
    #allocation7 [shape = 'u8[196608]{0}', space=vmem, size = 0x30000, scoped, tag = 'input window, operand 2, single buffered']
    #allocation8 [shape = 'u8[4096]{0}', space=vmem, size = 0x1000, scoped, tag = 'output window, operand 0, single buffered']
    %9 = vsyncpa [#allocation3], 0
    %10 = vsyncpa [#allocation6], 0
    %11 = vsyncpa [#allocation4], 0
    // Predicated region
    $region2: #{tpu_custom_call.1} parent=1 // pred_check
      _
    $region3: #{tpu_custom_call.1} parent=1 // pred_check_branch
      %13 = sbr.rel (0) target = $region5
    $region4: #{tpu_custom_call.1} parent=1 // pred_region
      %s15 = ssub.s32 128, 128
      %16 = vsyncadd [#allocation3], %s15
      %s18 = sshll.u32 [#allocation2], 4
      %s19 = int_to_ptr.vmem [resolvable:$true] %s18
      %21 = dma.hbm_to_vmem [thread:$0]  %s0, 128, %s19, [#allocation3]
    $region5: #{tpu_custom_call.1} parent=1 // pred_fallthru
      _
    // Predicated region
    $region6: #{tpu_custom_call.1} parent=1 // pred_check
      _
    $region7: #{tpu_custom_call.1} parent=1 // pred_check_branch
      %23 = sbr.rel (0) target = $region9
    $region8: #{tpu_custom_call.1} parent=1 // pred_region
      %s25 = ssub.s32 512, 512
      %26 = vsyncadd [#allocation6], %s25
      %s27 = sshll.u32 [#allocation5], 4
      %s28 = int_to_ptr.vmem [resolvable:$true] %s27
      %33 = dma.hbm_to_vmem [thread:$0]  %s1, 512, %s28, [#allocation6], 128, 128, 8
    $region9: #{tpu_custom_call.1} parent=1 // pred_fallthru
      _
    // Predicated region
    $region10: #{tpu_custom_call.1} parent=1 // pred_check
      _
    $region11: #{tpu_custom_call.1} parent=1 // pred_check_branch
      %35 = sbr.rel (0) target = $region13
    $region12: #{tpu_custom_call.1} parent=1 // pred_region
      %s37 = ssub.s32 6144, 6144
      %38 = vsyncadd [#allocation6], %s37
      %s39 = sshll.u32 [#allocation7], 4
      %s40 = int_to_ptr.vmem [resolvable:$true] %s39
      %45 = dma.hbm_to_vmem [thread:$0]  %s2, 6144, %s40, [#allocation6], 128, 128, 8
    $region13: #{tpu_custom_call.1} parent=1 // pred_fallthru
      _
    // Predicated region
    $region14: #{tpu_custom_call.1} parent=1 // pred_check
      _
    $region15: #{tpu_custom_call.1} parent=1 // pred_check_branch
      %47 = sbr.rel (0) target = $region17
    $region16: #{tpu_custom_call.1} parent=1 // pred_region
      _
    $region17: #{tpu_custom_call.1} parent=1 // pred_fallthru
      _
    // Predicated region
    $region18: #{tpu_custom_call.1} parent=1 // pred_check
      _
    $region19: #{tpu_custom_call.1} parent=1 // pred_check_branch
      %49 = sbr.rel (0) target = $region21
    $region20: #{tpu_custom_call.1} parent=1 // pred_region
      %50 = dma.done [#allocation3], 128
    $region21: #{tpu_custom_call.1} parent=1 // pred_fallthru
      _
    // Predicated region
    $region22: #{tpu_custom_call.1} parent=1 // pred_check
      _
    $region23: #{tpu_custom_call.1} parent=1 // pred_check_branch
      %52 = sbr.rel (0) target = $region25
    $region24: #{tpu_custom_call.1} parent=1 // pred_region
      %53 = dma.done [#allocation6], 512
    $region25: #{tpu_custom_call.1} parent=1 // pred_fallthru
      _
    // Predicated region
    $region26: #{tpu_custom_call.1} parent=1 // pred_check
      _
    $region27: #{tpu_custom_call.1} parent=1 // pred_check_branch
      %55 = sbr.rel (0) target = $region29
    $region28: #{tpu_custom_call.1} parent=1 // pred_region
      %56 = dma.done [#allocation6], 6144
    $region29: #{tpu_custom_call.1} parent=1 // pred_fallthru
      _
    %v57 = vld [vmem:[#allocation5] sm:$0xff]
    %v58 = vld [vmem:[#allocation5 + $0x8] sm:$0xff]
    %v59 = vld [vmem:[#allocation5 + $0x10] sm:$0xff]
    %v60 = vld [vmem:[#allocation5 + $0x18] sm:$0xff]
    %v61 = vld [vmem:[%s3] sm:$0x1]
    %s62 = scalar_lea.vmem %s3, 1
    %v63 = vld [vmem:[%s62] sm:$0x1]
    %s64 = scalar_lea.vmem %s3, 2
    %v65 = vld [vmem:[%s64] sm:$0x1]
    %s66 = scalar_lea.vmem %s3, 3
    %v67 = vld [vmem:[%s66] sm:$0x1]
    %v68 = vld [vmem:[#allocation2] sm:$0xff]
    %v70 = vlaneseq
    %v71 = vshrl.u32 %v70, 7
    %v72 = vsub.s32 0, %v71
    %v73 = vrot.slane %v61, %v72
    %vm75 = vcmask 261120
    %v77 = vsel %vm75, %v68, 0
    %79 = vmatprep.subr.mxu0 0.0
    %80 = vmatpush1.msra.mxu0 %v57
    %81 = vmatprep.subr.mxu0 0.0
    %82 = vmatpush1.msra.mxu0 %v58
    %83 = vmatprep.subr.mxu0 0.0
    %84 = vmatpush1.msra.mxu0 %v59
    %85 = vmatprep.subr.mxu0 0.0
    %86 = vmatpush1.msra.mxu0 %v60
    %87 = vmatprep.subr.mxu0 0.0
    %88 = vmatpush1.msra.mxu0 0.0
    %89 = vmatprep.subr.mxu0 0.0
    %90 = vmatpush1.msra.mxu0 0.0
    %91 = vmatprep.subr.mxu0 0.0
    %92 = vmatpush1.msra.mxu0 0.0
    %93 = vmatprep.subr.mxu0 0.0
    %94 = vmatpush1.msra.mxu0 0.0
    %95 = vmatprep.subr.mxu0 0.0
    %96 = vmatpush1.msra.mxu0 0.0
    %97 = vmatprep.subr.mxu0 0.0
    %98 = vmatpush1.msra.mxu0 0.0
    %99 = vmatprep.subr.mxu0 0.0
    %100 = vmatpush1.msra.mxu0 0.0
    %101 = vmatprep.subr.mxu0 0.0
    %102 = vmatpush1.msra.mxu0 0.0
    %103 = vmatprep.subr.mxu0 0.0
    %104 = vmatpush1.msra.mxu0 0.0
    %105 = vmatprep.subr.mxu0 0.0
    %106 = vmatpush1.msra.mxu0 0.0
    %107 = vmatprep.subr.mxu0 0.0
    %108 = vmatpush1.msra.mxu0 0.0
    %109 = vmatprep.subr.mxu0 0.0
    %110 = vmatpush1.msra.mxu0 0.0
    %111 = vmatprep.subr.mxu0 0.0
    %112 = vmatpush1.msra.mxu0 0.0
    %113 = vmatprep.subr.mxu0 0.0
    %114 = vmatpush1.msra.mxu0 0.0
    %115 = vmatprep.subr.mxu0 0.0
    %116 = vmatpush1.msra.mxu0 0.0
    %117 = vmatprep.subr.mxu0 0.0
    %118 = vmatpush1.msra.mxu0 0.0
    %119 = vmatprep.subr.mxu0 0.0
    %120 = vmatpush1.msra.mxu0 0.0
    %121 = vmatprep.subr.mxu0 0.0
    %122 = vmatpush1.msra.mxu0 0.0
    %123 = vmatprep.subr.mxu0 0.0
    %124 = vmatpush1.msra.mxu0 0.0
    %125 = vmatprep.subr.mxu0 0.0
    %126 = vmatpush1.msra.mxu0 0.0
    %127 = vmatprep.subr.mxu0 0.0
    %128 = vmatpush1.msra.mxu0 0.0
    %129 = vmatprep.subr.mxu0 0.0
    %130 = vmatpush1.msra.mxu0 0.0
    %131 = vmatprep.subr.mxu0 0.0
    %132 = vmatpush1.msra.mxu0 0.0
    %133 = vmatprep.subr.mxu0 0.0
    %134 = vmatpush1.msra.mxu0 0.0
    %135 = vmatprep.subr.mxu0 0.0
    %136 = vmatpush1.msra.mxu0 0.0
    %137 = vmatprep.subr.mxu0 0.0
    %138 = vmatpush1.msra.mxu0 0.0
    %139 = vmatprep.subr.mxu0 0.0
    %140 = vmatpush1.msra.mxu0 0.0
    %141 = vmatprep.subr.mxu0 0.0
    %142 = vmatpush1.msra.mxu0 0.0
    %143 = vmatprep.mubr.f32.mxu0 0.0
    %144 = vmatmul.mubr.f32.gmra.mrb[0].mxu0 %v77
    %v145 = vpop.f32.mrb[0].mxu0
    %v146 = vadd.f32 %v73, %v145
    %v147 = vpop.f32.mrb[0].mxu0
    %148 = vdwg.mxu0
    %v149 = vtanh.pop %v146
    %v150 = vld [vmem:[#allocation7] sm:$0xff]
    %v151 = vld [vmem:[#allocation7 + $0x8] sm:$0xff]
    %v152 = vld [vmem:[#allocation7 + $0x10] sm:$0xff]
    %v153 = vld [vmem:[#allocation7 + $0x18] sm:$0xff]
    %v154 = vld [vmem:[#allocation7 + $0x20] sm:$0xff]
    %v155 = vld [vmem:[#allocation7 + $0x28] sm:$0xff]
    %v156 = vld [vmem:[#allocation7 + $0x30] sm:$0xff]
    %v157 = vld [vmem:[#allocation7 + $0x38] sm:$0xff]
    %v158 = vld [vmem:[#allocation7 + $0x40] sm:$0xff]
    %v159 = vld [vmem:[#allocation7 + $0x48] sm:$0xff]
    %v160 = vld [vmem:[#allocation7 + $0x50] sm:$0xff]
    %v161 = vld [vmem:[#allocation7 + $0x58] sm:$0xff]
    %v162 = vld [vmem:[#allocation7 + $0x60] sm:$0xff]
    %v163 = vld [vmem:[#allocation7 + $0x68] sm:$0xff]
    %v164 = vld [vmem:[#allocation7 + $0x70] sm:$0xff]
    %v165 = vld [vmem:[#allocation7 + $0x78] sm:$0xff]
    %v167 = vlaneseq
    %v168 = vshrl.u32 %v167, 7
    %v169 = vsub.s32 0, %v168
    %v170 = vrot.slane %v63, %v169
    %172 = vmatprep.subr.mxu0 0.0
    %173 = vmatpush1.msra.mxu0 %v150
    %174 = vmatprep.subr.mxu0 0.0
    %175 = vmatpush1.msra.mxu0 %v151
    %176 = vmatprep.subr.mxu0 0.0
    %177 = vmatpush1.msra.mxu0 %v152
    %178 = vmatprep.subr.mxu0 0.0
    %179 = vmatpush1.msra.mxu0 %v153
    %180 = vmatprep.subr.mxu0 0.0
    %181 = vmatpush1.msra.mxu0 %v154
    %182 = vmatprep.subr.mxu0 0.0
    %183 = vmatpush1.msra.mxu0 %v155
    %184 = vmatprep.subr.mxu0 0.0
    %185 = vmatpush1.msra.mxu0 %v156
    %186 = vmatprep.subr.mxu0 0.0
    %187 = vmatpush1.msra.mxu0 %v157
    %188 = vmatprep.subr.mxu0 0.0
    %189 = vmatpush1.msra.mxu0 %v158
    %190 = vmatprep.subr.mxu0 0.0
    %191 = vmatpush1.msra.mxu0 %v159
    %192 = vmatprep.subr.mxu0 0.0
    %193 = vmatpush1.msra.mxu0 %v160
    %194 = vmatprep.subr.mxu0 0.0
    %195 = vmatpush1.msra.mxu0 %v161
    %196 = vmatprep.subr.mxu0 0.0
    %197 = vmatpush1.msra.mxu0 %v162
    %198 = vmatprep.subr.mxu0 0.0
    %199 = vmatpush1.msra.mxu0 %v163
    %200 = vmatprep.subr.mxu0 0.0
    %201 = vmatpush1.msra.mxu0 %v164
    %202 = vmatprep.subr.mxu0 0.0
    %203 = vmatpush1.msra.mxu0 %v165
    %204 = vmatprep.subr.mxu0 0.0
    %205 = vmatpush1.msra.mxu0 0.0
    %206 = vmatprep.subr.mxu0 0.0
    %207 = vmatpush1.msra.mxu0 0.0
    %208 = vmatprep.subr.mxu0 0.0
    %209 = vmatpush1.msra.mxu0 0.0
    %210 = vmatprep.subr.mxu0 0.0
    %211 = vmatpush1.msra.mxu0 0.0
    %212 = vmatprep.subr.mxu0 0.0
    %213 = vmatpush1.msra.mxu0 0.0
    %214 = vmatprep.subr.mxu0 0.0
    %215 = vmatpush1.msra.mxu0 0.0
    %216 = vmatprep.subr.mxu0 0.0
    %217 = vmatpush1.msra.mxu0 0.0
    %218 = vmatprep.subr.mxu0 0.0
    %219 = vmatpush1.msra.mxu0 0.0
    %220 = vmatprep.subr.mxu0 0.0
    %221 = vmatpush1.msra.mxu0 0.0
    %222 = vmatprep.subr.mxu0 0.0
    %223 = vmatpush1.msra.mxu0 0.0
    %224 = vmatprep.subr.mxu0 0.0
    %225 = vmatpush1.msra.mxu0 0.0
    %226 = vmatprep.subr.mxu0 0.0
    %227 = vmatpush1.msra.mxu0 0.0
    %228 = vmatprep.subr.mxu0 0.0
    %229 = vmatpush1.msra.mxu0 0.0
    %230 = vmatprep.subr.mxu0 0.0
    %231 = vmatpush1.msra.mxu0 0.0
    %232 = vmatprep.subr.mxu0 0.0
    %233 = vmatpush1.msra.mxu0 0.0
    %234 = vmatprep.subr.mxu0 0.0
    %235 = vmatpush1.msra.mxu0 0.0
    %236 = vmatprep.mubr.f32.mxu0 0.0
    %237 = vmatmul.mubr.f32.gmra.mrb[0].mxu0 %v149
    %v238 = vpop.f32.mrb[0].mxu0
    %v239 = vadd.f32 %v170, %v238
    %v240 = vpop.f32.mrb[0].mxu0
    %241 = vdwg.mxu0
    %v242 = vtanh.pop %v239
    %s243 = scalar_lea.vmem [#allocation7], 128
    %v244 = vld [vmem:[%s243] sm:$0xff]
    %v245 = vld [vmem:[%s243 + $0x8] sm:$0xff]
    %v246 = vld [vmem:[%s243 + $0x10] sm:$0xff]
    %v247 = vld [vmem:[%s243 + $0x18] sm:$0xff]
    %v248 = vld [vmem:[%s243 + $0x20] sm:$0xff]
    %v249 = vld [vmem:[%s243 + $0x28] sm:$0xff]
    %v250 = vld [vmem:[%s243 + $0x30] sm:$0xff]
    %v251 = vld [vmem:[%s243 + $0x38] sm:$0xff]
    %v252 = vld [vmem:[%s243 + $0x40] sm:$0xff]
    %v253 = vld [vmem:[%s243 + $0x48] sm:$0xff]
    %v254 = vld [vmem:[%s243 + $0x50] sm:$0xff]
    %v255 = vld [vmem:[%s243 + $0x58] sm:$0xff]
    %v256 = vld [vmem:[%s243 + $0x60] sm:$0xff]
    %v257 = vld [vmem:[%s243 + $0x68] sm:$0xff]
    %v258 = vld [vmem:[%s243 + $0x70] sm:$0xff]
    %v259 = vld [vmem:[%s243 + $0x78] sm:$0xff]
    %v261 = vlaneseq
    %v262 = vshrl.u32 %v261, 7
    %v263 = vsub.s32 0, %v262
    %v264 = vrot.slane %v65, %v263
    %266 = vmatprep.subr.mxu0 0.0
    %267 = vmatpush1.msra.mxu0 %v244
    %268 = vmatprep.subr.mxu0 0.0
    %269 = vmatpush1.msra.mxu0 %v245
    %270 = vmatprep.subr.mxu0 0.0
    %271 = vmatpush1.msra.mxu0 %v246
    %272 = vmatprep.subr.mxu0 0.0
    %273 = vmatpush1.msra.mxu0 %v247
    %274 = vmatprep.subr.mxu0 0.0
    %275 = vmatpush1.msra.mxu0 %v248
    %276 = vmatprep.subr.mxu0 0.0
    %277 = vmatpush1.msra.mxu0 %v249
    %278 = vmatprep.subr.mxu0 0.0
    %279 = vmatpush1.msra.mxu0 %v250
    %280 = vmatprep.subr.mxu0 0.0
    %281 = vmatpush1.msra.mxu0 %v251
    %282 = vmatprep.subr.mxu0 0.0
    %283 = vmatpush1.msra.mxu0 %v252
    %284 = vmatprep.subr.mxu0 0.0
    %285 = vmatpush1.msra.mxu0 %v253
    %286 = vmatprep.subr.mxu0 0.0
    %287 = vmatpush1.msra.mxu0 %v254
    %288 = vmatprep.subr.mxu0 0.0
    %289 = vmatpush1.msra.mxu0 %v255
    %290 = vmatprep.subr.mxu0 0.0
    %291 = vmatpush1.msra.mxu0 %v256
    %292 = vmatprep.subr.mxu0 0.0
    %293 = vmatpush1.msra.mxu0 %v257
    %294 = vmatprep.subr.mxu0 0.0
    %295 = vmatpush1.msra.mxu0 %v258
    %296 = vmatprep.subr.mxu0 0.0
    %297 = vmatpush1.msra.mxu0 %v259
    %298 = vmatprep.subr.mxu0 0.0
    %299 = vmatpush1.msra.mxu0 0.0
    %300 = vmatprep.subr.mxu0 0.0
    %301 = vmatpush1.msra.mxu0 0.0
    %302 = vmatprep.subr.mxu0 0.0
    %303 = vmatpush1.msra.mxu0 0.0
    %304 = vmatprep.subr.mxu0 0.0
    %305 = vmatpush1.msra.mxu0 0.0
    %306 = vmatprep.subr.mxu0 0.0
    %307 = vmatpush1.msra.mxu0 0.0
    %308 = vmatprep.subr.mxu0 0.0
    %309 = vmatpush1.msra.mxu0 0.0
    %310 = vmatprep.subr.mxu0 0.0
    %311 = vmatpush1.msra.mxu0 0.0
    %312 = vmatprep.subr.mxu0 0.0
    %313 = vmatpush1.msra.mxu0 0.0
    %314 = vmatprep.subr.mxu0 0.0
    %315 = vmatpush1.msra.mxu0 0.0
    %316 = vmatprep.subr.mxu0 0.0
    %317 = vmatpush1.msra.mxu0 0.0
    %318 = vmatprep.subr.mxu0 0.0
    %319 = vmatpush1.msra.mxu0 0.0
    %320 = vmatprep.subr.mxu0 0.0
    %321 = vmatpush1.msra.mxu0 0.0
    %322 = vmatprep.subr.mxu0 0.0
    %323 = vmatpush1.msra.mxu0 0.0
    %324 = vmatprep.subr.mxu0 0.0
    %325 = vmatpush1.msra.mxu0 0.0
    %326 = vmatprep.subr.mxu0 0.0
    %327 = vmatpush1.msra.mxu0 0.0
    %328 = vmatprep.subr.mxu0 0.0
    %329 = vmatpush1.msra.mxu0 0.0
    %330 = vmatprep.mubr.f32.mxu0 0.0
    %331 = vmatmul.mubr.f32.gmra.mrb[0].mxu0 %v242
    %v332 = vpop.f32.mrb[0].mxu0
    %v333 = vadd.f32 %v264, %v332
    %v334 = vpop.f32.mrb[0].mxu0
    %335 = vdwg.mxu0
    %v336 = vtanh.pop %v333
    %s337 = scalar_lea.vmem [#allocation7], 256
    %v338 = vld [vmem:[%s337] sm:$0xff]
    %v339 = vld [vmem:[%s337 + $0x8] sm:$0xff]
    %v340 = vld [vmem:[%s337 + $0x10] sm:$0xff]
    %v341 = vld [vmem:[%s337 + $0x18] sm:$0xff]
    %v342 = vld [vmem:[%s337 + $0x20] sm:$0xff]
    %v343 = vld [vmem:[%s337 + $0x28] sm:$0xff]
    %v344 = vld [vmem:[%s337 + $0x30] sm:$0xff]
    %v345 = vld [vmem:[%s337 + $0x38] sm:$0xff]
    %v346 = vld [vmem:[%s337 + $0x40] sm:$0xff]
    %v347 = vld [vmem:[%s337 + $0x48] sm:$0xff]
    %v348 = vld [vmem:[%s337 + $0x50] sm:$0xff]
    %v349 = vld [vmem:[%s337 + $0x58] sm:$0xff]
    %v350 = vld [vmem:[%s337 + $0x60] sm:$0xff]
    %v351 = vld [vmem:[%s337 + $0x68] sm:$0xff]
    %v352 = vld [vmem:[%s337 + $0x70] sm:$0xff]
    %v353 = vld [vmem:[%s337 + $0x78] sm:$0xff]
    %v355 = vlaneseq
    %v356 = vshrl.u32 %v355, 7
    %v357 = vsub.s32 0, %v356
    %v358 = vrot.slane %v67, %v357
    %360 = vmatprep.subr.mxu0 0.0
    %361 = vmatpush1.msra.mxu0 %v338
    %362 = vmatprep.subr.mxu0 0.0
    %363 = vmatpush1.msra.mxu0 %v339
    %364 = vmatprep.subr.mxu0 0.0
    %365 = vmatpush1.msra.mxu0 %v340
    %366 = vmatprep.subr.mxu0 0.0
    %367 = vmatpush1.msra.mxu0 %v341
    %368 = vmatprep.subr.mxu0 0.0
    %369 = vmatpush1.msra.mxu0 %v342
    %370 = vmatprep.subr.mxu0 0.0
    %371 = vmatpush1.msra.mxu0 %v343
    %372 = vmatprep.subr.mxu0 0.0
    %373 = vmatpush1.msra.mxu0 %v344
    %374 = vmatprep.subr.mxu0 0.0
    %375 = vmatpush1.msra.mxu0 %v345
    %376 = vmatprep.subr.mxu0 0.0
    %377 = vmatpush1.msra.mxu0 %v346
    %378 = vmatprep.subr.mxu0 0.0
    %379 = vmatpush1.msra.mxu0 %v347
    %380 = vmatprep.subr.mxu0 0.0
    %381 = vmatpush1.msra.mxu0 %v348
    %382 = vmatprep.subr.mxu0 0.0
    %383 = vmatpush1.msra.mxu0 %v349
    %384 = vmatprep.subr.mxu0 0.0
    %385 = vmatpush1.msra.mxu0 %v350
    %386 = vmatprep.subr.mxu0 0.0
    %387 = vmatpush1.msra.mxu0 %v351
    %388 = vmatprep.subr.mxu0 0.0
    %389 = vmatpush1.msra.mxu0 %v352
    %390 = vmatprep.subr.mxu0 0.0
    %391 = vmatpush1.msra.mxu0 %v353
    %392 = vmatprep.subr.mxu0 0.0
    %393 = vmatpush1.msra.mxu0 0.0
    %394 = vmatprep.subr.mxu0 0.0
    %395 = vmatpush1.msra.mxu0 0.0
    %396 = vmatprep.subr.mxu0 0.0
    %397 = vmatpush1.msra.mxu0 0.0
    %398 = vmatprep.subr.mxu0 0.0
    %399 = vmatpush1.msra.mxu0 0.0
    %400 = vmatprep.subr.mxu0 0.0
    %401 = vmatpush1.msra.mxu0 0.0
    %402 = vmatprep.subr.mxu0 0.0
    %403 = vmatpush1.msra.mxu0 0.0
    %404 = vmatprep.subr.mxu0 0.0
    %405 = vmatpush1.msra.mxu0 0.0
    %406 = vmatprep.subr.mxu0 0.0
    %407 = vmatpush1.msra.mxu0 0.0
    %408 = vmatprep.subr.mxu0 0.0
    %409 = vmatpush1.msra.mxu0 0.0
    %410 = vmatprep.subr.mxu0 0.0
    %411 = vmatpush1.msra.mxu0 0.0
    %412 = vmatprep.subr.mxu0 0.0
    %413 = vmatpush1.msra.mxu0 0.0
    %414 = vmatprep.subr.mxu0 0.0
    %415 = vmatpush1.msra.mxu0 0.0
    %416 = vmatprep.subr.mxu0 0.0
    %417 = vmatpush1.msra.mxu0 0.0
    %418 = vmatprep.subr.mxu0 0.0
    %419 = vmatpush1.msra.mxu0 0.0
    %420 = vmatprep.subr.mxu0 0.0
    %421 = vmatpush1.msra.mxu0 0.0
    %422 = vmatprep.subr.mxu0 0.0
    %423 = vmatpush1.msra.mxu0 0.0
    %424 = vmatprep.mubr.f32.mxu0 0.0
    %425 = vmatmul.mubr.f32.gmra.mrb[0].mxu0 %v336
    %v426 = vpop.f32.mrb[0].mxu0
    %v427 = vadd.f32 %v358, %v426
    %v428 = vpop.f32.mrb[0].mxu0
    %429 = vdwg.mxu0
    %430 = vst [vmem:[#allocation8] sm:$0xff] %v427
    // Predicated region
    $region30: #{tpu_custom_call.1} parent=1 // pred_check
      _
    $region31: #{tpu_custom_call.1} parent=1 // pred_check_branch
      %432 = sbr.rel (0) target = $region33
    $region32: #{tpu_custom_call.1} parent=1 // pred_region
      %s434 = ssub.s32 128, 128
      %435 = vsyncadd [#allocation4], %s434
      %s437 = sshll.u32 [#allocation8], 4
      %s438 = int_to_ptr.vmem [resolvable:$true] %s437
      %440 = dma.vmem_to_hbm [thread:$0]  %s438, 128, %s4, [#allocation4]
    $region33: #{tpu_custom_call.1} parent=1 // pred_fallthru
      _
    // Predicated region
    $region34: #{tpu_custom_call.1} parent=1 // pred_check
      _
    $region35: #{tpu_custom_call.1} parent=1 // pred_check_branch
      %442 = sbr.rel (0) target = $region37
    $region36: #{tpu_custom_call.1} parent=1 // pred_region
      %443 = dma.done [#allocation4], 128
    $region37: #{tpu_custom_call.1} parent=1 // pred_fallthru
      _
    %444 = vsyncpa [#allocation3], 1
    %445 = vsyncpa [#allocation6], 1
    %446 = vsyncpa [#allocation4], 1

</llo_original>
